<compile_context>
chip_gen: v7x
topology: tpu7x:2x2x1
jax: 0.10.0
libtpu: 0.0.40
codegen_flags: <defaults>
</compile_context>

<pallas_src>
import jax
import jax.numpy as jnp
from jax.experimental import pallas as pl
from jax.experimental.pallas import tpu as pltpu


_LANE_CANDIDATES = (512, 256, 128)  # lane widths, all multiples of 128


def _scale_shift_kernel(alpha_ref, beta_ref, x_ref, o_ref):
    # alpha_ref, beta_ref: (1,) f32 scalars in SMEM
    # x_ref, o_ref:        (tile_rows, lanes) tiles in VMEM
    a = alpha_ref[0]
    b = beta_ref[0]
    # Compute in f32 (promotion), store in output dtype.
    o_ref[...] = (x_ref[...] * a + b).astype(o_ref.dtype)


def _scale_shift_slab(x2, a32, b32, *, max_rows_per_tile, donate_input):
    """Run the kernel on a lane-dense (rows, lanes) slab."""
    rows, lanes = x2.shape
    dtype = x2.dtype
    itemsize = jnp.dtype(dtype).itemsize
    slab_bytes = rows * lanes * itemsize

    # Sublane granularity for non-full-dim row tiles (8 for f32, 16 for bf16, ...).
    sub = 8 * max(1, 4 // itemsize)

    if slab_bytes <= (1 << 20) or rows < 4 * sub:
        # Small slab: one block == full array dims (always a legal block shape).
        tile_rows = rows
    else:
        # At least 4 grid steps (megacore sharding + DMA/compute overlap),
        # capped at ~4 MiB per buffer; tile_rows a multiple of the sublane pack.
        target = -(-rows // 4)                 # ceil(rows / 4)
        target = -(-target // sub) * sub       # round up to sublane multiple
        tile_rows = min(max_rows_per_tile, target)

    grid = (pl.cdiv(rows, tile_rows),)

    extra = {}
    if donate_input:
        extra["input_output_aliases"] = {2: 0}  # x slab -> output

    return pl.pallas_call(
        _scale_shift_kernel,
        out_shape=jax.ShapeDtypeStruct((rows, lanes), dtype),
        grid=grid,
        in_specs=[
            pl.BlockSpec(memory_space=pltpu.MemorySpace.SMEM),   # alpha (1,) f32
            pl.BlockSpec(memory_space=pltpu.MemorySpace.SMEM),   # beta  (1,) f32
            pl.BlockSpec((tile_rows, lanes), lambda i: (i, 0)),  # x tile
        ],
        out_specs=pl.BlockSpec((tile_rows, lanes), lambda i: (i, 0)),
        compiler_params=pltpu.CompilerParams(
            dimension_semantics=("parallel",),
            # 2 arrays x 2 buffers x 4 MiB = 16 MiB worst case; 32 MiB scoped
            # VMEM is safe on v5e/v6e/v7x and leaves headroom.
            vmem_limit_bytes=32 * 1024 * 1024,
        ),
        **extra,
    )(a32, b32, x2)


def scale_and_shift(x, alpha, beta, *, max_rows_per_tile=2048, donate_input=False):
    """Elementwise x * alpha + beta for an arbitrary-shaped array x."""
    orig_shape = x.shape
    dtype = x.dtype
    total = x.size

    a32 = jnp.asarray(alpha, jnp.float32).reshape(-1)[:1]
    b32 = jnp.asarray(beta, jnp.float32).reshape(-1)[:1]

    if total == 0:
        return x

    flat = x.reshape(-1)

    # Prefer the widest lane count that divides the element count exactly:
    # the reshape is then a free view and there is no pad / slice traffic.
    lanes = None
    for cand in _LANE_CANDIDATES:
        if total % cand == 0:
            lanes = cand
            break

    if lanes is not None:
        out2 = _scale_shift_slab(
            flat.reshape(total // lanes, lanes), a32, b32,
            max_rows_per_tile=max_rows_per_tile, donate_input=donate_input)
        return out2.reshape(orig_shape)

    # Element count not a multiple of 128: run the kernel on the
    # lane-divisible prefix and do the tiny (<512 element) tail with plain jnp.
    lanes = _LANE_CANDIDATES[0]
    prefix = (total // lanes) * lanes
    tail_out = (flat[prefix:].astype(jnp.float32) * a32[0] + b32[0]).astype(dtype)
    if prefix == 0:
        return tail_out.reshape(orig_shape)
    head = _scale_shift_slab(
        flat[:prefix].reshape(prefix // lanes, lanes), a32, b32,
        max_rows_per_tile=max_rows_per_tile, donate_input=donate_input)
    return jnp.concatenate([head.reshape(-1), tail_out]).reshape(orig_shape)


def _reference(x, alpha, beta):
    return x * alpha.reshape(()) + beta.reshape(())


if __name__ == "__main__":
    key = jax.random.PRNGKey(0)
    x = jax.random.normal(key, (2, 4, 16, 16), dtype=jnp.float32)

    # Module parameters: alpha = torch.ones(1), beta = torch.zeros(1).
    alpha = jnp.ones((1,), jnp.float32)
    beta = jnp.zeros((1,), jnp.float32)

    out = jax.block_until_ready(scale_and_shift(x, alpha, beta))
    ref = _reference(x, alpha, beta)
    assert out.shape == x.shape, out.shape
    assert jnp.allclose(out, ref, atol=1e-6, rtol=1e-6), "mismatch vs reference"

    # Non-trivial alpha/beta + a 2 MiB input to exercise the multi-step grid
    # (rows=1024 -> tile_rows=256, grid=(4,)).
    alpha2 = jnp.full((1,), 0.5, jnp.float32)
    beta2 = jnp.full((1,), -0.25, jnp.float32)
    x2 = jax.random.normal(jax.random.PRNGKey(1), (2, 16, 128, 128), jnp.float32)
    out2 = jax.block_until_ready(scale_and_shift(x2, alpha2, beta2))
    assert jnp.allclose(out2, _reference(x2, alpha2, beta2), atol=1e-6, rtol=1e-6)

    # Non-128-divisible element count -> kernel on the prefix + jnp tail
    # (no full-array pad / slice passes).
    x3 = jax.random.normal(jax.random.PRNGKey(2), (3, 5, 7, 11), jnp.float32)
    out3 = jax.block_until_ready(scale_and_shift(x3, alpha2, beta2))
    assert jnp.allclose(out3, _reference(x3, alpha2, beta2), atol=1e-6, rtol=1e-6)

    print("KERNEL_OK")
</pallas_src>

<mosaic_0001>
module attributes {stable_mosaic.version = 11 : i64} {
  func.func @_scale_shift_kernel(%arg0: i32, %arg1: memref<1xf32, #tpu.memory_space<smem>>, %arg2: memref<1xf32, #tpu.memory_space<smem>>, %arg3: memref<4x512xf32, #tpu.memory_space<vmem>>, %arg4: memref<4x512xf32, #tpu.memory_space<vmem>>) attributes {dimension_semantics = [#tpu.dimension_semantics<parallel>], iteration_bounds = array<i64: 1>, scalar_prefetch = 0 : i64, scratch_operands = 0 : i64, tpu.core_type = #tpu.core_type<tc>, window_params = [{transform_indices = @transform_0, window_bounds = array<i64: 1>}, {transform_indices = @transform_1, window_bounds = array<i64: 1>}, {transform_indices = @transform_2, window_bounds = array<i64: 4, 512>}, {transform_indices = @transform_3, window_bounds = array<i64: 4, 512>}]} {
    %c0 = arith.constant 0 : index
    %0 = memref.load %arg1[%c0] : memref<1xf32, #tpu.memory_space<smem>>
    %c0_0 = arith.constant 0 : index
    %1 = memref.load %arg2[%c0_0] : memref<1xf32, #tpu.memory_space<smem>>
    %c0_1 = arith.constant 0 : index
    %c0_2 = arith.constant 0 : index
    %2 = vector.load %arg3[%c0_1, %c0_2] : memref<4x512xf32, #tpu.memory_space<vmem>>, vector<4x512xf32>
    %3 = vector.broadcast %0 : f32 to vector<4x512xf32>
    %4 = arith.mulf %2, %3 : vector<4x512xf32>
    %5 = vector.broadcast %1 : f32 to vector<4x512xf32>
    %6 = arith.addf %4, %5 : vector<4x512xf32>
    %c0_3 = arith.constant 0 : index
    %c0_4 = arith.constant 0 : index
    %7 = vector.load %arg4[%c0_3, %c0_4] : memref<4x512xf32, #tpu.memory_space<vmem>>, vector<4x512xf32>
    tpu.vector_store %arg4[%c0_3, %c0_4], %6 {strides = array<i32>} : memref<4x512xf32, #tpu.memory_space<vmem>>, vector<4x512xf32>,
    return
  }
  func.func @transform_0(%arg0: i32) -> i32 {
    %c0_i32 = arith.constant 0 : i32
    %c0_i32_0 = arith.constant 0 : i32
    return %c0_i32 : i32
  }
  func.func @transform_1(%arg0: i32) -> i32 {
    %c0_i32 = arith.constant 0 : i32
    %c0_i32_0 = arith.constant 0 : i32
    return %c0_i32 : i32
  }
  func.func @transform_2(%arg0: i32) -> (i32, i32) {
    %c0_i32 = arith.constant 0 : i32
    %c0_i32_0 = arith.constant 0 : i32
    return %arg0, %c0_i32 : i32, i32
  }
  func.func @transform_3(%arg0: i32) -> (i32, i32) {
    %c0_i32 = arith.constant 0 : i32
    %c0_i32_0 = arith.constant 0 : i32
    return %arg0, %c0_i32 : i32, i32
  }
}

</mosaic_0001>

<llo_original>
// kernel: tpu_custom_call.1
$region0: #{tpu_custom_call.1}
  #allocation0 [shape = 'u32[]', space=smem, size = 0x4, offset = 0x4, fixed_abs, tag = 'smem constant byte address 0x4 - core index']
  #allocation1 [shape = 'u32[144,128]{1,0:T(1,128)}', space=vmem, size = 0x12000, scoped, tag = 'internal scratch']
  #allocation2 [shape = 'f32[1]{0:T(128)S(6)}', space=smem, size = 0x200, scoped, tag = 'scoped memory for tpu_custom_call.1']
  #allocation3 [shape = 'f32[1]{0:T(128)S(6)}', space=smem, size = 0x200, scoped, tag = 'scoped memory for tpu_custom_call.1']
  %s0 = inlined_call_operand.<no memory space> [shape: f32[1], index: 0, kind: input, shape index: {}]
  %s1 = inlined_call_operand.<no memory space> [shape: f32[1], index: 1, kind: input, shape index: {}]
  %s2 = inlined_call_operand.hbm [shape: f32[4,512], index: 2, kind: input, shape index: {}]
  %s3 = inlined_call_operand.hbm [shape: f32[4,512], index: 3, kind: output, shape index: {}]
  %s4 = sld [smem:[#allocation0]]
  $region26: #{tpu_custom_call.1} parent=0
    _
  %s6 = ssub.s32 1, %s4
  %s7 = scalar_select 0, %s6, %s4
  %8 = sst [smem:[#allocation2]] %s0
  %9 = sst [smem:[#allocation3]] %s1
  $region1: #{tpu_custom_call.1} parent=0
    #allocation4 [shape = 'u8[8192]{0}', space=vmem, size = 0x2000, scoped, tag = 'input window, operand 2, single buffered']
    #allocation5 [shape = 's32[1]{0}', space=sflag, size = 0x4, scoped, tag = 'scoped memory for tpu_custom_call.1']
    #allocation6 [shape = 's32[1]{0}', space=sflag, size = 0x4, scoped, tag = 'scoped memory for tpu_custom_call.1']
    #allocation7 [shape = 'u8[8192]{0}', space=vmem, size = 0x2000, scoped, tag = 'output window, operand 0, single buffered']
    %10 = vsyncpa [#allocation5], 0
    %11 = vsyncpa [#allocation6], 0
    // Predicated region
    $region2: #{tpu_custom_call.1} parent=1 // pred_check
      _
    $region3: #{tpu_custom_call.1} parent=1 // pred_check_branch
      %13 = sbr.rel (0) target = $region5
    $region4: #{tpu_custom_call.1} parent=1 // pred_region
      _
    $region5: #{tpu_custom_call.1} parent=1 // pred_fallthru
      _
    // Predicated region
    $region6: #{tpu_custom_call.1} parent=1 // pred_check
      _
    $region7: #{tpu_custom_call.1} parent=1 // pred_check_branch
      %15 = sbr.rel (0) target = $region9
    $region8: #{tpu_custom_call.1} parent=1 // pred_region
      _
    $region9: #{tpu_custom_call.1} parent=1 // pred_fallthru
      _
    // Predicated region
    $region10: #{tpu_custom_call.1} parent=1 // pred_check
      _
    $region11: #{tpu_custom_call.1} parent=1 // pred_check_branch
      %17 = sbr.rel (0) target = $region13
    $region12: #{tpu_custom_call.1} parent=1 // pred_region
      %s19 = ssub.s32 256, 256
      %20 = vsyncadd [#allocation5], %s19
      %s22 = sshll.u32 [#allocation4], 4
      %s23 = int_to_ptr.vmem [resolvable:$true] %s22
      %25 = dma.hbm_to_vmem [thread:$0]  %s2, 256, %s23, [#allocation5]
    $region13: #{tpu_custom_call.1} parent=1 // pred_fallthru
      _
    // Predicated region
    $region14: #{tpu_custom_call.1} parent=1 // pred_check
      _
    $region15: #{tpu_custom_call.1} parent=1 // pred_check_branch
      %27 = sbr.rel (0) target = $region17
    $region16: #{tpu_custom_call.1} parent=1 // pred_region
      %28 = dma.done [#allocation5], 256
    $region17: #{tpu_custom_call.1} parent=1 // pred_fallthru
      _
    %s29 = sld [smem:[#allocation2]]
    %s30 = sld [smem:[#allocation3]]
    %v31 = vld [vmem:[#allocation4] sm:$0xff]
    %v32 = vld [vmem:[#allocation4 + $0x8] sm:$0xff]
    %v33 = vstv %s29
    %v34 = vmul.f32 %v31, %v33
    %v35 = vmul.f32 %v32, %v33
    %v36 = vstv %s30
    %v37 = vadd.f32 %v34, %v36
    %v38 = vadd.f32 %v35, %v36
    %39 = vst [vmem:[#allocation7] sm:$0xff] %v37
    %40 = vst [vmem:[#allocation7 + $0x8] sm:$0xff] %v38
    // Predicated region
    $region18: #{tpu_custom_call.1} parent=1 // pred_check
      _
    $region19: #{tpu_custom_call.1} parent=1 // pred_check_branch
      %42 = sbr.rel (0) target = $region21
    $region20: #{tpu_custom_call.1} parent=1 // pred_region
      %s44 = ssub.s32 256, 256
      %45 = vsyncadd [#allocation6], %s44
      %s47 = sshll.u32 [#allocation7], 4
      %s48 = int_to_ptr.vmem [resolvable:$true] %s47
      %50 = dma.vmem_to_hbm [thread:$0]  %s48, 256, %s3, [#allocation6]
    $region21: #{tpu_custom_call.1} parent=1 // pred_fallthru
      _
    // Predicated region
    $region22: #{tpu_custom_call.1} parent=1 // pred_check
      _
    $region23: #{tpu_custom_call.1} parent=1 // pred_check_branch
      %52 = sbr.rel (0) target = $region25
    $region24: #{tpu_custom_call.1} parent=1 // pred_region
      %53 = dma.done [#allocation6], 256
    $region25: #{tpu_custom_call.1} parent=1 // pred_fallthru
      _
    %54 = vsyncpa [#allocation5], 1
    %55 = vsyncpa [#allocation6], 1

</llo_original>
